<compile_context>
chip_gen: v6e
topology: v6e:2x2x1
jax: 0.10.0
libtpu: 0.0.40
codegen_flags: <defaults>
</compile_context>

<pallas_src>
import functools
import math

import jax
import jax.numpy as jnp
import numpy as np
from jax import lax
from jax.experimental import pallas as pl
from jax.experimental.pallas import tpu as pltpu

_N_BISECT = 10   # halves the initial bracket by 2^10
_N_NEWTON = 4    # exact finish on the piecewise-linear first-order condition
_LANE = 128
_TILE_M_CAP = 512


def _round_up(a: int, b: int) -> int:
    return (a + b - 1) // b * b


def _solve_columns(load, o_ref, *, lam, n):
    """Per-lane-column omega root-find + loss on one (N, TILE_M) tile.

    `load()` re-reads the (N, TILE_M) f32 data from VMEM each pass so no full
    tile value stays live across the loops (no hidden spill / duplicate VMEM).
    """
    inv2lam = 1.0 / (2.0 * lam)
    thresh = -float(n) * inv2lam      # root condition: sum(min(x + w, 0)) == thresh
    inv_n = 1.0 / float(n)

    # Bracket per column (1, TILE_M): g(lo) < 0 < g(hi), g nondecreasing.
    x0 = load()
    lo = -jnp.max(x0, axis=0, keepdims=True) - (inv2lam + 1.0)
    hi = -jnp.min(x0, axis=0, keepdims=True) + 1.0

    # Phase 1: bisection to localize the bracket (sum only: 3 VALU ops/elem).
    def bis_body(_, carry):
        lo_c, hi_c = carry
        mid = 0.5 * (lo_c + hi_c)
        s = jnp.sum(jnp.minimum(load() + mid, 0.0), axis=0, keepdims=True)
        go_up = s < thresh            # g(mid) < 0  ->  root is to the right
        return jnp.where(go_up, mid, lo_c), jnp.where(go_up, hi_c, mid)

    lo, hi = lax.fori_loop(0, _N_BISECT, bis_body, (lo, hi))

    # Phase 2: safeguarded Newton from the left.  g is concave increasing and
    # piecewise linear with slope = |{i : x_i + w < 0}|, so each step stays
    # <= root, increases monotonically, and is exact once w lies on the final
    # linear piece.  sum and count come from one xm evaluation (fused pass).
    def newton_body(_, w):
        xm = load() + w
        s = jnp.sum(jnp.minimum(xm, 0.0), axis=0, keepdims=True)
        cnt = jnp.sum(jnp.where(xm < 0.0, 1.0, 0.0), axis=0, keepdims=True)
        w_new = w - (s - thresh) / jnp.maximum(cnt, 1.0)
        return jnp.clip(w_new, lo, hi)   # pure float-safety guard

    omega = lax.fori_loop(0, _N_NEWTON, newton_body, lo)

    # Final CVaR value: omega + lam * mean(min(x + omega, 0)^2, axis=0).
    # TODO(synk): for N >~ 1e6 the plain f32 column sums should become a
    #             two-level (pairwise) reduction to keep the sign test stable.
    neg = jnp.minimum(load() + omega, 0.0)
    o_ref[...] = (omega + lam * (jnp.sum(neg * neg, axis=0, keepdims=True) * inv_n)
                  ).astype(o_ref.dtype)


def _qcvar_kernel(x_ref, o_ref, *, lam, n):
    """Scalar-target path: read the input block directly, no scratch."""
    _solve_columns(lambda: x_ref[...].astype(jnp.float32), o_ref, lam=lam, n=n)


def _qcvar_kernel_target(x_ref, t_ref, o_ref, y_s, *, lam, n):
    """Tensor-target path: x - t computed once per tile into VMEM scratch."""
    y_s[...] = x_ref[...].astype(jnp.float32) - t_ref[...].astype(jnp.float32)
    _solve_columns(lambda: y_s[...], o_ref, lam=lam, n=n)


def _vmem_capacity_bytes() -> int:
    try:
        cap = int(pltpu.get_tpu_info().vmem_capacity_bytes)
        if cap > 0:
            return cap
    except Exception:
        pass
    return 64 * 1024 * 1024   # conservative fallback (v7x physical per-TC VMEM)


def _pick_tile_m(n: int, m: int, n_streams: int, n_scratch: int, budget: int) -> int:
    """Largest lane tile whose per-block footprint fits the VMEM budget."""
    if m <= _LANE:
        # Single narrow block (block width == full array dim is always legal).
        # TODO(synk): for M < 128 lanes are under-filled; folding chunks of N
        #             into the lane axis would raise VPU utilization but needs
        #             a per-pass cross-lane combine -- skipped here.
        return m
    # Double-buffered f32 input streams + scratch + headroom for one
    # Mosaic-materialized (N, tile_m) elementwise temporary.
    bytes_per_col = 4 * n * (2 * n_streams + n_scratch + 1)
    fit = (budget // max(bytes_per_col, 1)) // _LANE * _LANE
    tile = max(_LANE, min(_TILE_M_CAP, fit))
    # Keep >= 2 grid tiles whenever possible so the ("parallel",) M axis feeds
    # both TensorCores on v7x (neutral on single-TC v5e/v6e).
    half = max(_LANE, _round_up((m + 1) // 2, _LANE))
    tile = min(tile, half)
    # TODO(synk): for very large N a single 128-lane column can exceed VMEM;
    #             that regime needs a two-level reduction over N (not handled).
    return min(tile, _round_up(m, _LANE))


def quadratic_cvar_loss(inp, target=0.0, *, lam=10.0):
    """QuadraticCVaR(lam).forward(inp, target).  inp: (N, *) -> output: (*)."""
    if not lam >= 1.0:
        raise ValueError("The lam should satisfy lam >= 1.")
    inp = jnp.asarray(inp, jnp.float32)
    n = inp.shape[0]
    trailing = inp.shape[1:]
    m = math.prod(trailing) if trailing else 1
    x2 = inp.reshape(n, m)

    scalar_target = jnp.ndim(target) == 0
    n_streams = 1 if scalar_target else 2
    n_scratch = 0 if scalar_target else 1

    cap = _vmem_capacity_bytes()
    budget = max(8 << 20, min(cap // 4, 24 << 20))        # per-block working set
    vmem_limit = max(16 << 20, min(cap // 2, 48 << 20))   # explicit scoped limit

    tile_m = _pick_tile_m(n, m, n_streams, n_scratch, budget)
    grid = ((m + tile_m - 1) // tile_m,)   # ragged last block; no jnp.pad pass

    x_spec = pl.BlockSpec((n, tile_m), lambda j: (0, j))
    out_spec = pl.BlockSpec((1, tile_m), lambda j: (0, j))
    cparams = pltpu.CompilerParams(
        dimension_semantics=("parallel",),   # independent M tiles -> megacore on v7x
        vmem_limit_bytes=int(vmem_limit),
    )

    if scalar_target:
        out = pl.pallas_call(
            functools.partial(_qcvar_kernel, lam=float(lam), n=n),
            out_shape=jax.ShapeDtypeStruct((1, m), jnp.float32),
            grid=grid,
            in_specs=[x_spec],
            out_specs=out_spec,
            compiler_params=cparams,
        )(x2)
        # Cash invariance: rho(X - c) = rho(X) + c -> scalar target is a free
        # add on the tiny (*) output instead of an in-kernel per-element op.
        out = out + jnp.asarray(target, jnp.float32)
    else:
        tgt = jnp.broadcast_to(jnp.asarray(target, jnp.float32), inp.shape).reshape(n, m)
        t_spec = pl.BlockSpec((n, tile_m), lambda j: (0, j))
        out = pl.pallas_call(
            functools.partial(_qcvar_kernel_target, lam=float(lam), n=n),
            out_shape=jax.ShapeDtypeStruct((1, m), jnp.float32),
            grid=grid,
            in_specs=[x_spec, t_spec],
            out_specs=out_spec,
            scratch_shapes=[pltpu.VMEM((n, tile_m), jnp.float32)],
            compiler_params=cparams,
        )(x2, tgt)

    return out.reshape(trailing)  # 0-dim if input was 1-D, matching PyTorch


def _quadratic_cvar_ref(inp, target=0.0, *, lam=10.0, iters=60):
    """Pure-JAX reference (plain bisection), for correctness checking only."""
    x = jnp.asarray(inp, jnp.float32) - jnp.asarray(target, jnp.float32)
    inv2lam = 1.0 / (2.0 * lam)
    lo = -jnp.max(x, axis=0, keepdims=True) - inv2lam - 1.0
    hi = -jnp.min(x, axis=0, keepdims=True) + 1.0
    for _ in range(iters):
        mid = 0.5 * (lo + hi)
        f = jnp.mean(jnp.minimum(x + mid, 0.0), axis=0, keepdims=True) + inv2lam
        go_up = f < 0.0
        lo = jnp.where(go_up, mid, lo)
        hi = jnp.where(go_up, hi, mid)
    omega = 0.5 * (lo + hi)
    neg = jnp.minimum(x + omega, 0.0)
    return (omega + lam * jnp.mean(neg * neg, axis=0, keepdims=True))[0]


if __name__ == "__main__":
    # Correctness check against the pfhedge docstring example:
    #   loss = QuadraticCVaR(2.0); loss(-arange(10.)) -> 7.9750
    ex = -jnp.arange(10.0)
    val = jax.block_until_ready(quadratic_cvar_loss(ex, 0.0, lam=2.0))
    assert abs(float(val) - 7.975) < 1e-3, float(val)

    # Main example at small shapes: N=64 paths, trailing dims (4, 8).
    key = jax.random.PRNGKey(0)
    k1, k2 = jax.random.split(key)
    x = jax.random.normal(k1, (64, 4, 8), dtype=jnp.float32)             # input  (N, *)
    target = 0.1 * jax.random.normal(k2, (64, 4, 8), dtype=jnp.float32)  # target (N, *)

    out = jax.block_until_ready(quadratic_cvar_loss(x, target, lam=10.0))  # (*) = (4, 8)
    assert out.shape == (4, 8) and out.dtype == jnp.float32
    ref = _quadratic_cvar_ref(x, target, lam=10.0)
    np.testing.assert_allclose(np.asarray(out), np.asarray(ref), rtol=1e-3, atol=1e-3)

    # Scalar-target path (single HBM stream, target folded via cash invariance).
    out2 = jax.block_until_ready(quadratic_cvar_loss(x, 0.25, lam=5.0))
    assert out2.shape == (4, 8)
    ref2 = _quadratic_cvar_ref(x, 0.25, lam=5.0)
    np.testing.assert_allclose(np.asarray(out2), np.asarray(ref2), rtol=1e-3, atol=1e-3)

    print("KERNEL_OK")
</pallas_src>

<mosaic_0001>
module attributes {stable_mosaic.version = 11 : i64} {
  func.func @_qcvar_kernel(%arg0: i32, %arg1: memref<10x1xf32, #tpu.memory_space<vmem>>, %arg2: memref<1x1xf32, #tpu.memory_space<vmem>>) attributes {dimension_semantics = [#tpu.dimension_semantics<parallel>], iteration_bounds = array<i64: 1>, scalar_prefetch = 0 : i64, scratch_operands = 0 : i64, tpu.core_type = #tpu.core_type<tc>, window_params = [{transform_indices = @transform_0, window_bounds = array<i64: 10, 1>}, {transform_indices = @transform_1, window_bounds = array<i64: 1, 1>}]} {
    %c0 = arith.constant 0 : index
    %c0_0 = arith.constant 0 : index
    %0 = vector.load %arg1[%c0, %c0_0] : memref<10x1xf32, #tpu.memory_space<vmem>>, vector<10x1xf32>
    %cst = arith.constant dense<0xFF800000> : vector<1xf32>
    %1 = vector.multi_reduction <maximumf>, %0, %cst [0] : vector<10x1xf32> to vector<1xf32>
    %2 = vector.shape_cast %1 : vector<1xf32> to vector<1x1xf32>
    %cst_1 = arith.constant 0.000000e+00 : f32
    %3 = vector.broadcast %cst_1 : f32 to vector<1x1xf32>
    %4 = arith.subf %3, %2 : vector<1x1xf32>
    %cst_2 = arith.constant 1.250000e+00 : f32
    %5 = vector.broadcast %cst_2 : f32 to vector<1x1xf32>
    %6 = arith.subf %4, %5 : vector<1x1xf32>
    %cst_3 = arith.constant dense<0x7F800000> : vector<1xf32>
    %7 = vector.multi_reduction <minimumf>, %0, %cst_3 [0] : vector<10x1xf32> to vector<1xf32>
    %8 = vector.shape_cast %7 : vector<1xf32> to vector<1x1xf32>
    %cst_4 = arith.constant 0.000000e+00 : f32
    %9 = vector.broadcast %cst_4 : f32 to vector<1x1xf32>
    %10 = arith.subf %9, %8 : vector<1x1xf32>
    %cst_5 = arith.constant 1.000000e+00 : f32
    %11 = vector.broadcast %cst_5 : f32 to vector<1x1xf32>
    %12 = arith.addf %10, %11 : vector<1x1xf32>
    %c0_i32 = arith.constant 0 : i32
    %c10_i32 = arith.constant 10 : i32
    %13 = arith.addi %c0_i32, %c10_i32 : i32
    %c1_i32 = arith.constant 1 : i32
    %14:2 = scf.for %arg3 = %c0_i32 to %13 step %c1_i32 iter_args(%arg4 = %6, %arg5 = %12) -> (vector<1x1xf32>, vector<1x1xf32>)  : i32 {
      %31 = arith.addf %arg4, %arg5 : vector<1x1xf32>
      %cst_16 = arith.constant 5.000000e-01 : f32
      %32 = vector.broadcast %cst_16 : f32 to vector<1x1xf32>
      %33 = arith.mulf %32, %31 : vector<1x1xf32>
      %c0_17 = arith.constant 0 : index
      %c0_18 = arith.constant 0 : index
      %34 = vector.load %arg1[%c0_17, %c0_18] : memref<10x1xf32, #tpu.memory_space<vmem>>, vector<10x1xf32>
      %35 = vector.broadcast %33 : vector<1x1xf32> to vector<10x1xf32>
      %36 = arith.addf %34, %35 : vector<10x1xf32>
      %cst_19 = arith.constant 0.000000e+00 : f32
      %37 = vector.broadcast %cst_19 : f32 to vector<10x1xf32>
      %38 = arith.minimumf %36, %37 : vector<10x1xf32>
      %cst_20 = arith.constant dense<0.000000e+00> : vector<1xf32>
      %39 = vector.multi_reduction <add>, %38, %cst_20 [0] : vector<10x1xf32> to vector<1xf32>
      %40 = vector.shape_cast %39 : vector<1xf32> to vector<1x1xf32>
      %cst_21 = arith.constant -2.500000e+00 : f32
      %41 = vector.broadcast %cst_21 : f32 to vector<1x1xf32>
      %42 = arith.cmpf olt, %40, %41 : vector<1x1xf32>
      %43 = arith.select %42, %33, %arg4 : vector<1x1xi1>, vector<1x1xf32>
      %44 = arith.select %42, %arg5, %33 : vector<1x1xi1>, vector<1x1xf32>
      scf.yield %43, %44 : vector<1x1xf32>, vector<1x1xf32>
    }
    %c0_i32_6 = arith.constant 0 : i32
    %c4_i32 = arith.constant 4 : i32
    %15 = arith.addi %c0_i32_6, %c4_i32 : i32
    %c1_i32_7 = arith.constant 1 : i32
    %16 = scf.for %arg3 = %c0_i32_6 to %15 step %c1_i32_7 iter_args(%arg4 = %14#0) -> (vector<1x1xf32>)  : i32 {
      %c0_16 = arith.constant 0 : index
      %c0_17 = arith.constant 0 : index
      %31 = vector.load %arg1[%c0_16, %c0_17] : memref<10x1xf32, #tpu.memory_space<vmem>>, vector<10x1xf32>
      %32 = vector.broadcast %arg4 : vector<1x1xf32> to vector<10x1xf32>
      %33 = arith.addf %31, %32 : vector<10x1xf32>
      %cst_18 = arith.constant 0.000000e+00 : f32
      %34 = vector.broadcast %cst_18 : f32 to vector<10x1xf32>
      %35 = arith.minimumf %33, %34 : vector<10x1xf32>
      %cst_19 = arith.constant dense<0.000000e+00> : vector<1xf32>
      %36 = vector.multi_reduction <add>, %35, %cst_19 [0] : vector<10x1xf32> to vector<1xf32>
      %37 = vector.shape_cast %36 : vector<1xf32> to vector<1x1xf32>
      %cst_20 = arith.constant 0.000000e+00 : f32
      %38 = vector.broadcast %cst_20 : f32 to vector<10x1xf32>
      %39 = arith.cmpf olt, %33, %38 : vector<10x1xf32>
      %cst_21 = arith.constant 1.000000e+00 : f32
      %cst_22 = arith.constant 0.000000e+00 : f32
      %40 = vector.broadcast %cst_21 : f32 to vector<10x1xf32>
      %41 = vector.broadcast %cst_22 : f32 to vector<10x1xf32>
      %42 = arith.select %39, %40, %41 : vector<10x1xi1>, vector<10x1xf32>
      %cst_23 = arith.constant dense<0.000000e+00> : vector<1xf32>
      %43 = vector.multi_reduction <add>, %42, %cst_23 [0] : vector<10x1xf32> to vector<1xf32>
      %44 = vector.shape_cast %43 : vector<1xf32> to vector<1x1xf32>
      %cst_24 = arith.constant -2.500000e+00 : f32
      %45 = vector.broadcast %cst_24 : f32 to vector<1x1xf32>
      %46 = arith.subf %37, %45 : vector<1x1xf32>
      %cst_25 = arith.constant 1.000000e+00 : f32
      %47 = vector.broadcast %cst_25 : f32 to vector<1x1xf32>
      %48 = arith.maximumf %44, %47 : vector<1x1xf32>
      %49 = arith.divf %46, %48 : vector<1x1xf32>
      %50 = arith.subf %arg4, %49 : vector<1x1xf32>
      %51 = arith.maximumf %14#0, %50 : vector<1x1xf32>
      %52 = arith.minimumf %14#1, %51 : vector<1x1xf32>
      scf.yield %52 : vector<1x1xf32>
    }
    %c0_8 = arith.constant 0 : index
    %c0_9 = arith.constant 0 : index
    %17 = vector.load %arg1[%c0_8, %c0_9] : memref<10x1xf32, #tpu.memory_space<vmem>>, vector<10x1xf32>
    %18 = vector.broadcast %16 : vector<1x1xf32> to vector<10x1xf32>
    %19 = arith.addf %17, %18 : vector<10x1xf32>
    %cst_10 = arith.constant 0.000000e+00 : f32
    %20 = vector.broadcast %cst_10 : f32 to vector<10x1xf32>
    %21 = arith.minimumf %19, %20 : vector<10x1xf32>
    %22 = arith.mulf %21, %21 : vector<10x1xf32>
    %cst_11 = arith.constant dense<0.000000e+00> : vector<1xf32>
    %23 = vector.multi_reduction <add>, %22, %cst_11 [0] : vector<10x1xf32> to vector<1xf32>
    %24 = vector.shape_cast %23 : vector<1xf32> to vector<1x1xf32>
    %cst_12 = arith.constant 1.000000e-01 : f32
    %25 = vector.broadcast %cst_12 : f32 to vector<1x1xf32>
    %26 = arith.mulf %24, %25 : vector<1x1xf32>
    %cst_13 = arith.constant 2.000000e+00 : f32
    %27 = vector.broadcast %cst_13 : f32 to vector<1x1xf32>
    %28 = arith.mulf %27, %26 : vector<1x1xf32>
    %29 = arith.addf %16, %28 : vector<1x1xf32>
    %c0_14 = arith.constant 0 : index
    %c0_15 = arith.constant 0 : index
    %30 = vector.load %arg2[%c0_14, %c0_15] : memref<1x1xf32, #tpu.memory_space<vmem>>, vector<1x1xf32>
    tpu.vector_store %arg2[%c0_14, %c0_15], %29 {strides = array<i32>} : memref<1x1xf32, #tpu.memory_space<vmem>>, vector<1x1xf32>,
    return
  }
  func.func @transform_0(%arg0: i32) -> (i32, i32) {
    %c0_i32 = arith.constant 0 : i32
    %c0_i32_0 = arith.constant 0 : i32
    return %c0_i32, %arg0 : i32, i32
  }
  func.func @transform_1(%arg0: i32) -> (i32, i32) {
    %c0_i32 = arith.constant 0 : i32
    %c0_i32_0 = arith.constant 0 : i32
    return %c0_i32, %arg0 : i32, i32
  }
}

</mosaic_0001>

<llo_original>
// kernel: tpu_custom_call.1
$region0: #{tpu_custom_call.1}
  #allocation0 [shape = 'u32[]', space=smem, size = 0x4, offset = 0x4, fixed_abs, tag = 'smem constant byte address 0x4 - core index']
  #allocation1 [shape = 'u32[144,128]{1,0:T(1,128)}', space=vmem, size = 0x12000, scoped, tag = 'internal scratch']
  %s0 = inlined_call_operand.vmem [shape: f32[10,1], index: 0, kind: input, shape index: {}]
  %s1 = inlined_call_operand.hbm [shape: f32[1,1], index: 1, kind: output, shape index: {}]
  %s2 = sld [smem:[#allocation0]]
  $region28: #{tpu_custom_call.1} parent=0
    _
  %s4 = ssub.s32 1, %s2
  %s5 = scalar_select 0, %s4, %s2
  $region1: #{tpu_custom_call.1} parent=0
    #allocation2 [shape = 'u8[512]{0}', space=vmem, size = 0x400, scoped, tag = 'output window, operand 0, single buffered']
    #allocation3 [shape = 's32[1]{0}', space=sflag, size = 0x4, scoped, tag = 'scoped memory for tpu_custom_call.1']
    %6 = vsyncpa [#allocation3], 0
    // Predicated region
    $region2: #{tpu_custom_call.1} parent=1 // pred_check
      _
    $region3: #{tpu_custom_call.1} parent=1 // pred_check_branch
      %8 = sbr.rel (0) target = $region5
    $region4: #{tpu_custom_call.1} parent=1 // pred_region
      _
    $region5: #{tpu_custom_call.1} parent=1 // pred_fallthru
      _
    %v9 = vld [vmem:[%s0] sm:$0xff]
    %v10 = vld [vmem:[%s0 + $0x8] sm:$0x3]
    %vm11 = vcmask 7168
    %v12 = vsel %vm11, %v9, -inf
    %vm13 = vcmask 1024
    %v14 = vsel %vm13, %v10, -inf
    %v15 = vmax.f32 %v12, %v14
    %v16 = vrot.slane %v15, 4
    %v17 = vmax.f32 %v15, %v16
    %v18 = vrot.slane %v17, 2
    %v19 = vmax.f32 %v17, %v18
    %v20 = vrot.slane %v19, 1
    %v21 = vmax.f32 %v19, %v20
    %v22 = vsub.f32 0.0, %v21
    %v23 = vsub.f32 %v22, 1.25
    %v24 = vsel %vm11, %v9, inf
    %v25 = vsel %vm13, %v10, inf
    %v26 = vmin.f32 %v24, %v25
    %v27 = vrot.slane %v26, 4
    %v28 = vmin.f32 %v26, %v27
    %v29 = vrot.slane %v28, 2
    %v30 = vmin.f32 %v28, %v29
    %v31 = vrot.slane %v30, 1
    %v32 = vmin.f32 %v30, %v31
    %v33 = vsub.f32 0.0, %v32
    %v34 = vadd.f32 %v33, 1.0
    loop: start=0, step=1, limit=10
    $region6: #{tpu_custom_call.1} parent=1 // loop_pre_header
      _
    $region7: #{tpu_custom_call.1} parent=1 // loop_header
      %s36 = sphi 0, %s40
      %p37 = scmp.ge.s32.totalorder %s36, 10
      %v41 = vphi %v23, %v61
      %v42 = vphi %v34, %v62
    $region8: #{tpu_custom_call.1} parent=1 // loop_header_branch
      %39 = sbr.rel (%p37) target = $region12
    $region9: #{tpu_custom_call.1} parent=1 // loop_body
      %v43 = vadd.f32 %v41, %v42
      %v44 = vmul.f32 %v43, 0.5
      %v45 = vld [vmem:[%s0] sm:$0xff]
      %v46 = vld [vmem:[%s0 + $0x8] sm:$0x3]
      %v47 = vadd.f32 %v45, %v44
      %v48 = vadd.f32 %v46, %v44
      %v49 = vmin.f32 %v47, 0.0
      %v50 = vmin.f32 %v48, 0.0
      %v51 = vsel %vm11, %v49, 0.0
      %v52 = vsel %vm13, %v50, 0.0
      %v53 = vadd.f32 %v51, %v52
      %v54 = vrot.slane %v53, 4
      %v55 = vadd.f32 %v53, %v54
      %v56 = vrot.slane %v55, 2
      %v57 = vadd.f32 %v55, %v56
      %v58 = vrot.slane %v57, 1
      %v59 = vadd.f32 %v57, %v58
      %vm60 = vcmp.lt.f32.partialorder %v59, -2.5
      %v61 = vsel %vm60, %v44, %v41
      %v62 = vsel %vm60, %v42, %v44
    $region10: #{tpu_custom_call.1} parent=1 // loop_footer
      %s40 = sadd.s32 1, %s36
    $region11: #{tpu_custom_call.1} parent=1 // loop_footer_branch
      %35 = sbr.rel target = $region7
    $region12: #{tpu_custom_call.1} parent=1 // loop_exit
      _
    loop: start=0, step=1, limit=4
    $region13: #{tpu_custom_call.1} parent=1 // loop_pre_header
      _
    $region14: #{tpu_custom_call.1} parent=1 // loop_header
      %s64 = sphi 0, %s68
      %p65 = scmp.ge.s32.totalorder %s64, 4
      %v69 = vphi %v41, %v104
    $region15: #{tpu_custom_call.1} parent=1 // loop_header_branch
      %67 = sbr.rel (%p65) target = $region19
    $region16: #{tpu_custom_call.1} parent=1 // loop_body
      %v70 = vld [vmem:[%s0] sm:$0xff]
      %v71 = vld [vmem:[%s0 + $0x8] sm:$0x3]
      %v72 = vadd.f32 %v70, %v69
      %v73 = vadd.f32 %v71, %v69
      %v74 = vmin.f32 %v72, 0.0
      %v75 = vmin.f32 %v73, 0.0
      %v76 = vsel %vm11, %v74, 0.0
      %v77 = vsel %vm13, %v75, 0.0
      %v78 = vadd.f32 %v76, %v77
      %v79 = vrot.slane %v78, 4
      %v80 = vadd.f32 %v78, %v79
      %v81 = vrot.slane %v80, 2
      %v82 = vadd.f32 %v80, %v81
      %v83 = vrot.slane %v82, 1
      %v84 = vadd.f32 %v82, %v83
      %vm85 = vcmp.lt.f32.partialorder %v72, 0.0
      %vm86 = vcmp.lt.f32.partialorder %v73, 0.0
      %v87 = vsel %vm85, 1.0, 0.0
      %v88 = vsel %vm86, 1.0, 0.0
      %v89 = vsel %vm11, %v87, 0.0
      %v90 = vsel %vm13, %v88, 0.0
      %v91 = vadd.f32 %v89, %v90
      %v92 = vrot.slane %v91, 4
      %v93 = vadd.f32 %v91, %v92
      %v94 = vrot.slane %v93, 2
      %v95 = vadd.f32 %v93, %v94
      %v96 = vrot.slane %v95, 1
      %v97 = vadd.f32 %v95, %v96
      %v98 = vsub.f32 %v84, -2.5
      %v99 = vmax.f32 %v97, 1.0
      %v100 = vrcp.pop %v99
      %v101 = vmul.f32 %v98, %v100
      %v102 = vsub.f32 %v69, %v101
      %v103 = vmax.f32 %v41, %v102
      %v104 = vmin.f32 %v42, %v103
    $region17: #{tpu_custom_call.1} parent=1 // loop_footer
      %s68 = sadd.s32 1, %s64
    $region18: #{tpu_custom_call.1} parent=1 // loop_footer_branch
      %63 = sbr.rel target = $region14
    $region19: #{tpu_custom_call.1} parent=1 // loop_exit
      _
    %v105 = vadd.f32 %v9, %v69
    %v106 = vadd.f32 %v10, %v69
    %v107 = vmin.f32 %v105, 0.0
    %v108 = vmin.f32 %v106, 0.0
    %v109 = vmul.f32 %v107, %v107
    %v110 = vmul.f32 %v108, %v108
    %v111 = vsel %vm11, %v109, 0.0
    %v112 = vsel %vm13, %v110, 0.0
    %v113 = vadd.f32 %v111, %v112
    %v114 = vrot.slane %v113, 4
    %v115 = vadd.f32 %v113, %v114
    %v116 = vrot.slane %v115, 2
    %v117 = vadd.f32 %v115, %v116
    %v118 = vrot.slane %v117, 1
    %v119 = vadd.f32 %v117, %v118
    %v120 = vmul.f32 %v119, 0.1
    %v121 = vmul.f32 %v120, 2.0
    %v122 = vadd.f32 %v69, %v121
    %vm123 = vcmask 0
    %124 = vst.msk [vmem:[#allocation2] sm:$0x1] %vm123, %v122
    // Predicated region
    $region20: #{tpu_custom_call.1} parent=1 // pred_check
      _
    $region21: #{tpu_custom_call.1} parent=1 // pred_check_branch
      %126 = sbr.rel (0) target = $region23
    $region22: #{tpu_custom_call.1} parent=1 // pred_region
      %s128 = ssub.s32 16, 16
      %129 = vsyncadd [#allocation3], %s128
      %s131 = sshll.u32 [#allocation2], 4
      %s132 = int_to_ptr.vmem [resolvable:$true] %s131
      %134 = dma.vmem_to_hbm [thread:$0]  %s132, 16, %s1, [#allocation3]
    $region23: #{tpu_custom_call.1} parent=1 // pred_fallthru
      _
    // Predicated region
    $region24: #{tpu_custom_call.1} parent=1 // pred_check
      _
    $region25: #{tpu_custom_call.1} parent=1 // pred_check_branch
      %136 = sbr.rel (0) target = $region27
    $region26: #{tpu_custom_call.1} parent=1 // pred_region
      %137 = dma.done [#allocation3], 16
    $region27: #{tpu_custom_call.1} parent=1 // pred_fallthru
      _
    %138 = vsyncpa [#allocation3], 1

</llo_original>
